<compile_context>
chip_gen: v7x
topology: tpu7x:2x2x1
jax: 0.10.0
libtpu: 0.0.40
codegen_flags: <defaults>
</compile_context>

<pallas_src>
import functools
import math

import jax
import jax.numpy as jnp
from jax.experimental import pallas as pl
from jax.experimental.pallas import tpu as pltpu


def _round_up(n: int, m: int) -> int:
    return ((n + m - 1) // m) * m


_SQRT_2_OVER_PI = 0.7978845608028654


def _gelu_tanh(x):
    # tanh-approximation GELU (== torch F.gelu(approximate='tanh')).
    # ~1e-3 max abs deviation from torch's default erf GELU; tanh runs on the EUP slot.
    return 0.5 * x * (1.0 + jnp.tanh(_SQRT_2_OVER_PI * (x + 0.044715 * x * x * x)))


# ------------------------------------ kernel ---------------------------------------

def _forecaster_kernel(x_ref,      # (TB, Din)       last-timestep input tile (pipelined)
                       win_ref,    # (Din, H)        input_proj weight   (resident)
                       bin_ref,    # (1, H)          input_proj bias     (resident)
                       wf_ref,     # (L, H, H)       fused FAN weights [Wp | Wp | Wg]
                       bf_ref,     # (L, 1, H)       fused FAN biases  [bp+ph, bp+ph-pi/2, bg]
                       wout_ref,   # (H, O_pad)      output_proj weight (lane-padded)
                       bout_ref,   # (1, O_pad)      output_proj bias   (lane-padded)
                       o_ref,      # (TB, O_pad)     output tile (lane-dense)
                       *, p_dim, compute_dtype):
    n_layers, _, hidden = wf_ref.shape

    # Input projection + GELU; the hidden state `h` stays in vregs for the whole kernel.
    h = _gelu_tanh(
        jnp.dot(x_ref[...].astype(compute_dtype), win_ref[...],
                preferred_element_type=jnp.float32)
        + bin_ref[...]
    )

    aligned = (2 * p_dim) % 128 == 0
    if not aligned:
        # Lane mask selecting the periodic band (first 2P lanes = cos|sin columns).
        lane = jax.lax.broadcasted_iota(jnp.int32, (1, hidden), 1)
        periodic = lane < (2 * p_dim)

    # FAN phase-offset layers, statically unrolled (layer count is small).
    # Each layer is a single full-width (lane-dense) MXU matmul; dropout = identity (eval).
    for l in range(n_layers):
        z = jnp.dot(h.astype(compute_dtype), wf_ref[l],
                    preferred_element_type=jnp.float32) + bf_ref[l]
        if aligned:
            # 2P is a multiple of 128 -> aligned static slices, exactly one
            # transcendental per element.
            h = jnp.concatenate(
                [jnp.cos(z[:, : 2 * p_dim]), _gelu_tanh(z[:, 2 * p_dim:])], axis=-1)
        else:
            # H=128 default: band boundary (2P=64) is not lane-aligned, so select with a
            # lane mask instead of slicing (avoids XLU relayout every layer).
            h = jnp.where(periodic, jnp.cos(z), _gelu_tanh(z))

    # Single full-width, lane-dense store of the padded output projection.
    o_ref[...] = (
        jnp.dot(h.astype(compute_dtype), wout_ref[...],
                preferred_element_type=jnp.float32)
        + bout_ref[...]
    )


# ----------------------------------- wrapper ----------------------------------------

def phase_offset_forecaster(x, params, *, horizon, output_dim,
                            tile_b=None, compute_dtype=jnp.float32):
    """x: (B, S, Din) float32.  Returns (B, horizon, output_dim) float32."""
    B = x.shape[0]
    x_last = x[:, -1, :]                                   # glue: x[:, -1, :]
    d_in = x_last.shape[1]
    hidden = params["w_in"].shape[1]
    n_layers, _, p_dim = params["phase"].shape

    # --- weight layout plumbing (runs once under jit) ---------------------------------
    # Fuse [Wp | Wp | Wg] so the per-layer matmul width is 2P+G = H (lane-dense); fold
    # the learnable phase and the sin(x)=cos(x - pi/2) shift into the bias.
    w_f = jnp.concatenate([params["w_p"], params["w_p"], params["w_g"]], axis=-1)
    b_per = params["b_p"] + params["phase"]
    b_f = jnp.concatenate(
        [b_per, b_per - jnp.float32(math.pi / 2.0), params["b_g"]], axis=-1)

    # Pad output-projection columns to a lane-dense multiple of 128.
    o_cols = horizon * output_dim
    o_pad = _round_up(max(o_cols, 1), 128)
    w_out = jnp.pad(params["w_out"], ((0, 0), (0, o_pad - o_cols)))
    b_out = jnp.pad(params["b_out"], ((0, 0), (0, o_pad - o_cols)))

    # Opt-in reduced precision for the matmul operands (biases stay f32; accumulation f32).
    w_in = params["w_in"].astype(compute_dtype)
    b_in = params["b_in"]
    w_f = w_f.astype(compute_dtype)
    w_out = w_out.astype(compute_dtype)

    # --- generation-aware VMEM / tile budget -------------------------------------------
    try:
        vmem_cap = int(pltpu.get_tpu_info().vmem_capacity_bytes)
    except Exception:
        vmem_cap = 128 << 20
    if tile_b is None:
        # v5e/v6e (128 MiB VMEM): bigger batch tile amortizes the ~0.35us/step overhead.
        # v7x (64 MiB VMEM): keep 128.
        tile_b = 256 if vmem_cap >= (96 << 20) else 128

    # Batch tiling: for small batches split into >=2 sublane-aligned tiles so a second
    # TensorCore (v7x) has work; otherwise use the full tile.
    if B >= 2 * tile_b:
        tb = tile_b
    else:
        tb = max(8, _round_up((B + 1) // 2, 8))
    b_padded = _round_up(B, tb)
    x_pad = jnp.pad(x_last, ((0, b_padded - B), (0, 0)))
    grid = (b_padded // tb,)

    wb = jnp.dtype(compute_dtype).itemsize
    weight_bytes = (wb * (w_in.size + w_f.size + w_out.size)
                    + 4 * (b_in.size + b_f.size + b_out.size))
    act_bytes = 4 * tb * (d_in + o_pad)                    # one x tile + one out tile
    # Resident weights single-buffered, x/out tiles double-buffered; leave headroom for
    # Mosaic internal scratch and vreg spills, and never request all of physical VMEM.
    vmem_limit = weight_bytes + 2 * act_bytes + (8 << 20)
    vmem_limit = int(max(16 << 20, min(vmem_limit, int(vmem_cap * 0.85))))

    def _resident(shape):
        zeros = (0,) * len(shape)
        return pl.BlockSpec(shape, lambda b, _z=zeros: _z,
                            pipeline_mode=pl.Buffered(1))   # constant block: single buffer

    flops = 2 * b_padded * (d_in * hidden + n_layers * hidden * hidden + hidden * o_pad)
    transcendentals = b_padded * hidden * (n_layers + 1)
    bytes_accessed = weight_bytes + 4 * (x_pad.size + b_padded * o_pad)
    cost = pl.CostEstimate(flops=flops, transcendentals=transcendentals,
                           bytes_accessed=bytes_accessed)

    kernel = functools.partial(_forecaster_kernel, p_dim=p_dim,
                               compute_dtype=compute_dtype)

    out = pl.pallas_call(
        kernel,
        out_shape=jax.ShapeDtypeStruct((b_padded, o_pad), jnp.float32),
        grid_spec=pltpu.PrefetchScalarGridSpec(
            num_scalar_prefetch=0,
            grid=grid,
            in_specs=[
                pl.BlockSpec((tb, d_in), lambda b: (b, 0)),     # x tile (pipelined)
                _resident((d_in, hidden)),                      # w_in
                _resident((1, hidden)),                         # b_in
                _resident((n_layers, hidden, hidden)),          # fused FAN W
                _resident((n_layers, 1, hidden)),               # fused FAN b
                _resident((hidden, o_pad)),                     # w_out
                _resident((1, o_pad)),                          # b_out
            ],
            out_specs=pl.BlockSpec((tb, o_pad), lambda b: (b, 0)),
        ),
        compiler_params=pltpu.CompilerParams(
            dimension_semantics=("parallel",),   # batch axis sharded across TCs on v7x
            vmem_limit_bytes=vmem_limit,
        ),
        cost_estimate=cost,
    )(x_pad, w_in, b_in, w_f, b_f, w_out, b_out)

    out = out[:B, :o_cols]
    return out.reshape(B, horizon, output_dim)               # glue: view(B, horizon, out)


# ------------------------------ reference & init -------------------------------------

def _reference_forward(x, params, *, horizon, output_dim):
    """Pure-JAX reference with identical math (same tanh-GELU, same FAN assumption)."""
    h = _gelu_tanh(x[:, -1, :] @ params["w_in"] + params["b_in"])
    for l in range(params["phase"].shape[0]):
        p = h @ params["w_p"][l] + params["b_p"][l] + params["phase"][l]
        g = h @ params["w_g"][l] + params["b_g"][l]
        h = jnp.concatenate([jnp.cos(p), jnp.sin(p), _gelu_tanh(g)], axis=-1)
    y = h @ params["w_out"] + params["b_out"]
    return y.reshape(x.shape[0], horizon, output_dim)


def init_params(key, *, input_dim, hidden_dim, output_dim, horizon, n_fan_layers):
    p_dim = hidden_dim // 4
    g_dim = hidden_dim - 2 * p_dim

    def linear(k, fan_in, fan_out):
        # PyTorch nn.Linear default: U(-1/sqrt(fan_in), 1/sqrt(fan_in)) for W and b.
        kw, kb = jax.random.split(k)
        bound = 1.0 / math.sqrt(fan_in)
        w = jax.random.uniform(kw, (fan_in, fan_out), jnp.float32, -bound, bound)
        b = jax.random.uniform(kb, (1, fan_out), jnp.float32, -bound, bound)
        return w, b

    keys = jax.random.split(key, 2 + 2 * n_fan_layers)
    w_in, b_in = linear(keys[0], input_dim, hidden_dim)
    w_out, b_out = linear(keys[1], hidden_dim, output_dim * horizon)

    w_p, b_p, w_g, b_g = [], [], [], []
    for l in range(n_fan_layers):
        wp, bp = linear(keys[2 + 2 * l], hidden_dim, p_dim)
        wg, bg = linear(keys[3 + 2 * l], hidden_dim, g_dim)
        w_p.append(wp); b_p.append(bp); w_g.append(wg); b_g.append(bg)

    return {
        "w_in": w_in, "b_in": b_in,
        "w_p": jnp.stack(w_p), "b_p": jnp.stack(b_p),       # (L, H, P), (L, 1, P)
        "w_g": jnp.stack(w_g), "b_g": jnp.stack(b_g),       # (L, H, G), (L, 1, G)
        # learnable phase offsets; zero init reduces the layer to the plain FAN layer.
        "phase": jnp.zeros((n_fan_layers, 1, p_dim), jnp.float32),
        "w_out": w_out, "b_out": b_out,
    }


# -------------------------------------- main -----------------------------------------

if __name__ == "__main__":
    # small shapes consistent with the module (hidden = module default 128, lane-dense)
    B, S, D_IN = 2, 8, 4
    HIDDEN, OUT_DIM, HORIZON, N_LAYERS = 128, 1, 12, 3

    key = jax.random.PRNGKey(0)
    k_x, k_p = jax.random.split(key)
    x = jax.random.normal(k_x, (B, S, D_IN), jnp.float32)
    params = init_params(
        k_p,
        input_dim=D_IN, hidden_dim=HIDDEN, output_dim=OUT_DIM,
        horizon=HORIZON, n_fan_layers=N_LAYERS,
    )

    fwd = jax.jit(
        functools.partial(phase_offset_forecaster, horizon=HORIZON, output_dim=OUT_DIM)
    )
    y = fwd(x, params)
    jax.block_until_ready(y)

    y_ref = _reference_forward(x, params, horizon=HORIZON, output_dim=OUT_DIM)
    assert y.shape == (B, HORIZON, OUT_DIM), y.shape
    assert bool(jnp.all(jnp.isfinite(y)))
    assert bool(jnp.allclose(y, y_ref, atol=2e-2, rtol=2e-2)), \
        float(jnp.max(jnp.abs(y - y_ref)))
    print("KERNEL_OK")
</pallas_src>

<mosaic_0001>
module attributes {stable_mosaic.version = 11 : i64} {
  func.func @_forecaster_kernel(%arg0: i32, %arg1: memref<8x4xf32, #tpu.memory_space<vmem>>, %arg2: memref<4x128xf32, #tpu.memory_space<vmem>>, %arg3: memref<1x128xf32, #tpu.memory_space<vmem>>, %arg4: memref<3x128x128xf32, #tpu.memory_space<vmem>>, %arg5: memref<3x1x128xf32, #tpu.memory_space<vmem>>, %arg6: memref<128x128xf32, #tpu.memory_space<vmem>>, %arg7: memref<1x128xf32, #tpu.memory_space<vmem>>, %arg8: memref<8x128xf32, #tpu.memory_space<vmem>>) attributes {dimension_semantics = [#tpu.dimension_semantics<parallel>], iteration_bounds = array<i64: 1>, scalar_prefetch = 0 : i64, scratch_operands = 0 : i64, tpu.core_type = #tpu.core_type<tc>, window_params = [{transform_indices = @transform_0, window_bounds = array<i64: 8, 4>}, {pipeline_mode = #tpu.pipeline_mode<synchronous>, transform_indices = @transform_1, window_bounds = array<i64: 4, 128>}, {pipeline_mode = #tpu.pipeline_mode<synchronous>, transform_indices = @transform_2, window_bounds = array<i64: 1, 128>}, {pipeline_mode = #tpu.pipeline_mode<synchronous>, transform_indices = @transform_3, window_bounds = array<i64: 3, 128, 128>}, {pipeline_mode = #tpu.pipeline_mode<synchronous>, transform_indices = @transform_4, window_bounds = array<i64: 3, 1, 128>}, {pipeline_mode = #tpu.pipeline_mode<synchronous>, transform_indices = @transform_5, window_bounds = array<i64: 128, 128>}, {pipeline_mode = #tpu.pipeline_mode<synchronous>, transform_indices = @transform_6, window_bounds = array<i64: 1, 128>}, {transform_indices = @transform_7, window_bounds = array<i64: 8, 128>}]} {
    %c0 = arith.constant 0 : index
    %c0_0 = arith.constant 0 : index
    %0 = vector.load %arg1[%c0, %c0_0] : memref<8x4xf32, #tpu.memory_space<vmem>>, vector<8x4xf32>
    %c0_1 = arith.constant 0 : index
    %c0_2 = arith.constant 0 : index
    %1 = vector.load %arg2[%c0_1, %c0_2] : memref<4x128xf32, #tpu.memory_space<vmem>>, vector<4x128xf32>
    %cst = arith.constant dense<0.000000e+00> : vector<8x128xf32>
    %2 = tpu.matmul %0, %1, %cst {dimension_numbers = #tpu.dot_dimension_numbers<[1], [0], [0], [1], [0, 0, 1, 1], [], []>} : vector<8x4xf32>, vector<4x128xf32>, vector<8x128xf32> -> vector<8x128xf32>
    %c0_3 = arith.constant 0 : index
    %c0_4 = arith.constant 0 : index
    %3 = vector.load %arg3[%c0_3, %c0_4] : memref<1x128xf32, #tpu.memory_space<vmem>>, vector<1x128xf32>
    %4 = vector.broadcast %3 : vector<1x128xf32> to vector<8x128xf32>
    %5 = arith.addf %2, %4 : vector<8x128xf32>
    %cst_5 = arith.constant 5.000000e-01 : f32
    %6 = vector.broadcast %cst_5 : f32 to vector<8x128xf32>
    %7 = arith.mulf %6, %5 : vector<8x128xf32>
    %cst_6 = arith.constant 4.471500e-02 : f32
    %8 = vector.broadcast %cst_6 : f32 to vector<8x128xf32>
    %9 = arith.mulf %8, %5 : vector<8x128xf32>
    %10 = arith.mulf %9, %5 : vector<8x128xf32>
    %11 = arith.mulf %10, %5 : vector<8x128xf32>
    %12 = arith.addf %5, %11 : vector<8x128xf32>
    %cst_7 = arith.constant 0.797884583 : f32
    %13 = vector.broadcast %cst_7 : f32 to vector<8x128xf32>
    %14 = arith.mulf %13, %12 : vector<8x128xf32>
    %15 = math.tanh %14 : vector<8x128xf32>
    %cst_8 = arith.constant 1.000000e+00 : f32
    %16 = vector.broadcast %cst_8 : f32 to vector<8x128xf32>
    %17 = arith.addf %16, %15 : vector<8x128xf32>
    %18 = arith.mulf %7, %17 : vector<8x128xf32>
    %19 = tpu.iota {dimensions = array<i32: 1>} : vector<1x128xi32>
    %c64_i32 = arith.constant 64 : i32
    %20 = vector.broadcast %c64_i32 : i32 to vector<1x128xi32>
    %21 = arith.cmpi slt, %19, %20 : vector<1x128xi32>
    %c0_9 = arith.constant 0 : index
    %c0_10 = arith.constant 0 : index
    %c0_11 = arith.constant 0 : index
    %22 = vector.load %arg4[%c0_9, %c0_10, %c0_11] : memref<3x128x128xf32, #tpu.memory_space<vmem>>, vector<1x128x128xf32>
    %23 = vector.shape_cast %22 : vector<1x128x128xf32> to vector<128x128xf32>
    %cst_12 = arith.constant dense<0.000000e+00> : vector<8x128xf32>
    %24 = tpu.matmul %18, %23, %cst_12 {dimension_numbers = #tpu.dot_dimension_numbers<[1], [0], [0], [1], [0, 0, 1, 1], [], []>} : vector<8x128xf32>, vector<128x128xf32>, vector<8x128xf32> -> vector<8x128xf32>
    %c0_13 = arith.constant 0 : index
    %c0_14 = arith.constant 0 : index
    %c0_15 = arith.constant 0 : index
    %25 = vector.load %arg5[%c0_13, %c0_14, %c0_15] : memref<3x1x128xf32, #tpu.memory_space<vmem>>, vector<1x1x128xf32>
    %26 = vector.shape_cast %25 : vector<1x1x128xf32> to vector<1x128xf32>
    %27 = vector.broadcast %26 : vector<1x128xf32> to vector<8x128xf32>
    %28 = arith.addf %24, %27 : vector<8x128xf32>
    %29 = math.cos %28 : vector<8x128xf32>
    %cst_16 = arith.constant 5.000000e-01 : f32
    %30 = vector.broadcast %cst_16 : f32 to vector<8x128xf32>
    %31 = arith.mulf %30, %28 : vector<8x128xf32>
    %cst_17 = arith.constant 4.471500e-02 : f32
    %32 = vector.broadcast %cst_17 : f32 to vector<8x128xf32>
    %33 = arith.mulf %32, %28 : vector<8x128xf32>
    %34 = arith.mulf %33, %28 : vector<8x128xf32>
    %35 = arith.mulf %34, %28 : vector<8x128xf32>
    %36 = arith.addf %28, %35 : vector<8x128xf32>
    %cst_18 = arith.constant 0.797884583 : f32
    %37 = vector.broadcast %cst_18 : f32 to vector<8x128xf32>
    %38 = arith.mulf %37, %36 : vector<8x128xf32>
    %39 = math.tanh %38 : vector<8x128xf32>
    %cst_19 = arith.constant 1.000000e+00 : f32
    %40 = vector.broadcast %cst_19 : f32 to vector<8x128xf32>
    %41 = arith.addf %40, %39 : vector<8x128xf32>
    %42 = arith.mulf %31, %41 : vector<8x128xf32>
    %43 = vector.shape_cast %21 : vector<1x128xi1> to vector<1x128xi1>
    %44 = vector.broadcast %43 : vector<1x128xi1> to vector<8x128xi1>
    %45 = arith.select %44, %29, %42 : vector<8x128xi1>, vector<8x128xf32>
    %c1 = arith.constant 1 : index
    %c0_20 = arith.constant 0 : index
    %c0_21 = arith.constant 0 : index
    %46 = vector.load %arg4[%c1, %c0_20, %c0_21] : memref<3x128x128xf32, #tpu.memory_space<vmem>>, vector<1x128x128xf32>
    %47 = vector.shape_cast %46 : vector<1x128x128xf32> to vector<128x128xf32>
    %cst_22 = arith.constant dense<0.000000e+00> : vector<8x128xf32>
    %48 = tpu.matmul %45, %47, %cst_22 {dimension_numbers = #tpu.dot_dimension_numbers<[1], [0], [0], [1], [0, 0, 1, 1], [], []>} : vector<8x128xf32>, vector<128x128xf32>, vector<8x128xf32> -> vector<8x128xf32>
    %c1_23 = arith.constant 1 : index
    %c0_24 = arith.constant 0 : index
    %c0_25 = arith.constant 0 : index
    %49 = vector.load %arg5[%c1_23, %c0_24, %c0_25] : memref<3x1x128xf32, #tpu.memory_space<vmem>>, vector<1x1x128xf32>
    %50 = vector.shape_cast %49 : vector<1x1x128xf32> to vector<1x128xf32>
    %51 = vector.broadcast %50 : vector<1x128xf32> to vector<8x128xf32>
    %52 = arith.addf %48, %51 : vector<8x128xf32>
    %53 = math.cos %52 : vector<8x128xf32>
    %cst_26 = arith.constant 5.000000e-01 : f32
    %54 = vector.broadcast %cst_26 : f32 to vector<8x128xf32>
    %55 = arith.mulf %54, %52 : vector<8x128xf32>
    %cst_27 = arith.constant 4.471500e-02 : f32
    %56 = vector.broadcast %cst_27 : f32 to vector<8x128xf32>
    %57 = arith.mulf %56, %52 : vector<8x128xf32>
    %58 = arith.mulf %57, %52 : vector<8x128xf32>
    %59 = arith.mulf %58, %52 : vector<8x128xf32>
    %60 = arith.addf %52, %59 : vector<8x128xf32>
    %cst_28 = arith.constant 0.797884583 : f32
    %61 = vector.broadcast %cst_28 : f32 to vector<8x128xf32>
    %62 = arith.mulf %61, %60 : vector<8x128xf32>
    %63 = math.tanh %62 : vector<8x128xf32>
    %cst_29 = arith.constant 1.000000e+00 : f32
    %64 = vector.broadcast %cst_29 : f32 to vector<8x128xf32>
    %65 = arith.addf %64, %63 : vector<8x128xf32>
    %66 = arith.mulf %55, %65 : vector<8x128xf32>
    %67 = vector.shape_cast %21 : vector<1x128xi1> to vector<1x128xi1>
    %68 = vector.broadcast %67 : vector<1x128xi1> to vector<8x128xi1>
    %69 = arith.select %68, %53, %66 : vector<8x128xi1>, vector<8x128xf32>
    %c2 = arith.constant 2 : index
    %c0_30 = arith.constant 0 : index
    %c0_31 = arith.constant 0 : index
    %70 = vector.load %arg4[%c2, %c0_30, %c0_31] : memref<3x128x128xf32, #tpu.memory_space<vmem>>, vector<1x128x128xf32>
    %71 = vector.shape_cast %70 : vector<1x128x128xf32> to vector<128x128xf32>
    %cst_32 = arith.constant dense<0.000000e+00> : vector<8x128xf32>
    %72 = tpu.matmul %69, %71, %cst_32 {dimension_numbers = #tpu.dot_dimension_numbers<[1], [0], [0], [1], [0, 0, 1, 1], [], []>} : vector<8x128xf32>, vector<128x128xf32>, vector<8x128xf32> -> vector<8x128xf32>
    %c2_33 = arith.constant 2 : index
    %c0_34 = arith.constant 0 : index
    %c0_35 = arith.constant 0 : index
    %73 = vector.load %arg5[%c2_33, %c0_34, %c0_35] : memref<3x1x128xf32, #tpu.memory_space<vmem>>, vector<1x1x128xf32>
    %74 = vector.shape_cast %73 : vector<1x1x128xf32> to vector<1x128xf32>
    %75 = vector.broadcast %74 : vector<1x128xf32> to vector<8x128xf32>
    %76 = arith.addf %72, %75 : vector<8x128xf32>
    %77 = math.cos %76 : vector<8x128xf32>
    %cst_36 = arith.constant 5.000000e-01 : f32
    %78 = vector.broadcast %cst_36 : f32 to vector<8x128xf32>
    %79 = arith.mulf %78, %76 : vector<8x128xf32>
    %cst_37 = arith.constant 4.471500e-02 : f32
    %80 = vector.broadcast %cst_37 : f32 to vector<8x128xf32>
    %81 = arith.mulf %80, %76 : vector<8x128xf32>
    %82 = arith.mulf %81, %76 : vector<8x128xf32>
    %83 = arith.mulf %82, %76 : vector<8x128xf32>
    %84 = arith.addf %76, %83 : vector<8x128xf32>
    %cst_38 = arith.constant 0.797884583 : f32
    %85 = vector.broadcast %cst_38 : f32 to vector<8x128xf32>
    %86 = arith.mulf %85, %84 : vector<8x128xf32>
    %87 = math.tanh %86 : vector<8x128xf32>
    %cst_39 = arith.constant 1.000000e+00 : f32
    %88 = vector.broadcast %cst_39 : f32 to vector<8x128xf32>
    %89 = arith.addf %88, %87 : vector<8x128xf32>
    %90 = arith.mulf %79, %89 : vector<8x128xf32>
    %91 = vector.shape_cast %21 : vector<1x128xi1> to vector<1x128xi1>
    %92 = vector.broadcast %91 : vector<1x128xi1> to vector<8x128xi1>
    %93 = arith.select %92, %77, %90 : vector<8x128xi1>, vector<8x128xf32>
    %c0_40 = arith.constant 0 : index
    %c0_41 = arith.constant 0 : index
    %94 = vector.load %arg6[%c0_40, %c0_41] : memref<128x128xf32, #tpu.memory_space<vmem>>, vector<128x128xf32>
    %cst_42 = arith.constant dense<0.000000e+00> : vector<8x128xf32>
    %95 = tpu.matmul %93, %94, %cst_42 {dimension_numbers = #tpu.dot_dimension_numbers<[1], [0], [0], [1], [0, 0, 1, 1], [], []>} : vector<8x128xf32>, vector<128x128xf32>, vector<8x128xf32> -> vector<8x128xf32>
    %c0_43 = arith.constant 0 : index
    %c0_44 = arith.constant 0 : index
    %96 = vector.load %arg7[%c0_43, %c0_44] : memref<1x128xf32, #tpu.memory_space<vmem>>, vector<1x128xf32>
    %97 = vector.broadcast %96 : vector<1x128xf32> to vector<8x128xf32>
    %98 = arith.addf %95, %97 : vector<8x128xf32>
    %c0_45 = arith.constant 0 : index
    %c0_46 = arith.constant 0 : index
    %99 = vector.load %arg8[%c0_45, %c0_46] : memref<8x128xf32, #tpu.memory_space<vmem>>, vector<8x128xf32>
    tpu.vector_store %arg8[%c0_45, %c0_46], %98 {strides = array<i32>} : memref<8x128xf32, #tpu.memory_space<vmem>>, vector<8x128xf32>,
    return
  }
  func.func @transform_0(%arg0: i32) -> (i32, i32) {
    %c0_i32 = arith.constant 0 : i32
    %c0_i32_0 = arith.constant 0 : i32
    return %arg0, %c0_i32 : i32, i32
  }
  func.func @transform_1(%arg0: i32) -> (i32, i32) {
    %c0_i32 = arith.constant 0 : i32
    %c0_i32_0 = arith.constant 0 : i32
    %c0_i32_1 = arith.constant 0 : i32
    return %c0_i32, %c0_i32_0 : i32, i32
  }
  func.func @transform_2(%arg0: i32) -> (i32, i32) {
    %c0_i32 = arith.constant 0 : i32
    %c0_i32_0 = arith.constant 0 : i32
    %c0_i32_1 = arith.constant 0 : i32
    return %c0_i32, %c0_i32_0 : i32, i32
  }
  func.func @transform_3(%arg0: i32) -> (i32, i32, i32) {
    %c0_i32 = arith.constant 0 : i32
    %c0_i32_0 = arith.constant 0 : i32
    %c0_i32_1 = arith.constant 0 : i32
    %c0_i32_2 = arith.constant 0 : i32
    return %c0_i32, %c0_i32_0, %c0_i32_1 : i32, i32, i32
  }
  func.func @transform_4(%arg0: i32) -> (i32, i32, i32) {
    %c0_i32 = arith.constant 0 : i32
    %c0_i32_0 = arith.constant 0 : i32
    %c0_i32_1 = arith.constant 0 : i32
    %c0_i32_2 = arith.constant 0 : i32
    return %c0_i32, %c0_i32_0, %c0_i32_1 : i32, i32, i32
  }
  func.func @transform_5(%arg0: i32) -> (i32, i32) {
    %c0_i32 = arith.constant 0 : i32
    %c0_i32_0 = arith.constant 0 : i32
    %c0_i32_1 = arith.constant 0 : i32
    return %c0_i32, %c0_i32_0 : i32, i32
  }
  func.func @transform_6(%arg0: i32) -> (i32, i32) {
    %c0_i32 = arith.constant 0 : i32
    %c0_i32_0 = arith.constant 0 : i32
    %c0_i32_1 = arith.constant 0 : i32
    return %c0_i32, %c0_i32_0 : i32, i32
  }
  func.func @transform_7(%arg0: i32) -> (i32, i32) {
    %c0_i32 = arith.constant 0 : i32
    %c0_i32_0 = arith.constant 0 : i32
    return %arg0, %c0_i32 : i32, i32
  }
}

</mosaic_0001>

<llo_original>
// kernel: phase_offset_forecaster.1
$region0: #{phase_offset_forecaster.1}
  #allocation0 [shape = 'u32[]', space=smem, size = 0x4, offset = 0x4, fixed_abs, tag = 'smem constant byte address 0x4 - core index']
  #allocation1 [shape = 'u32[144,128]{1,0:T(1,128)}', space=vmem, size = 0x12000, scoped, tag = 'internal scratch']
  %s0 = inlined_call_operand.vmem [shape: f32[8,4], index: 0, kind: input, shape index: {}]
  %s1 = inlined_call_operand.vmem [shape: f32[4,128], index: 1, kind: input, shape index: {}]
  %s2 = inlined_call_operand.vmem [shape: f32[1,128], index: 2, kind: input, shape index: {}]
  %s3 = inlined_call_operand.vmem [shape: f32[3,128,128], index: 3, kind: input, shape index: {}]
  %s4 = inlined_call_operand.vmem [shape: f32[3,1,128], index: 4, kind: input, shape index: {}]
  %s5 = inlined_call_operand.vmem [shape: f32[128,128], index: 5, kind: input, shape index: {}]
  %s6 = inlined_call_operand.vmem [shape: f32[1,128], index: 6, kind: input, shape index: {}]
  %s7 = inlined_call_operand.vmem [shape: f32[8,128], index: 7, kind: output, shape index: {}]
  %s8 = sld [smem:[#allocation0]]
  $region38: #{phase_offset_forecaster.1} parent=0
    _
  %s10 = ssub.s32 1, %s8
  %s11 = scalar_select 0, %s10, %s8
  // Predicated region
  $region2: #{phase_offset_forecaster.1} parent=0 // pred_check
    _
  $region3: #{phase_offset_forecaster.1} parent=0 // pred_check_branch
    %13 = sbr.rel (0) target = $region5
  $region4: #{phase_offset_forecaster.1} parent=0 // pred_region
    _
  $region5: #{phase_offset_forecaster.1} parent=0 // pred_fallthru
    _
  // Predicated region
  $region6: #{phase_offset_forecaster.1} parent=0 // pred_check
    _
  $region7: #{phase_offset_forecaster.1} parent=0 // pred_check_branch
    %15 = sbr.rel (0) target = $region9
  $region8: #{phase_offset_forecaster.1} parent=0 // pred_region
    _
  $region9: #{phase_offset_forecaster.1} parent=0 // pred_fallthru
    _
  // Predicated region
  $region10: #{phase_offset_forecaster.1} parent=0 // pred_check
    _
  $region11: #{phase_offset_forecaster.1} parent=0 // pred_check_branch
    %17 = sbr.rel (0) target = $region13
  $region12: #{phase_offset_forecaster.1} parent=0 // pred_region
    _
  $region13: #{phase_offset_forecaster.1} parent=0 // pred_fallthru
    _
  // Predicated region
  $region14: #{phase_offset_forecaster.1} parent=0 // pred_check
    _
  $region15: #{phase_offset_forecaster.1} parent=0 // pred_check_branch
    %19 = sbr.rel (0) target = $region17
  $region16: #{phase_offset_forecaster.1} parent=0 // pred_region
    _
  $region17: #{phase_offset_forecaster.1} parent=0 // pred_fallthru
    _
  // Predicated region
  $region18: #{phase_offset_forecaster.1} parent=0 // pred_check
    _
  $region19: #{phase_offset_forecaster.1} parent=0 // pred_check_branch
    %21 = sbr.rel (0) target = $region21
  $region20: #{phase_offset_forecaster.1} parent=0 // pred_region
    _
  $region21: #{phase_offset_forecaster.1} parent=0 // pred_fallthru
    _
  // Predicated region
  $region22: #{phase_offset_forecaster.1} parent=0 // pred_check
    _
  $region23: #{phase_offset_forecaster.1} parent=0 // pred_check_branch
    %23 = sbr.rel (0) target = $region25
  $region24: #{phase_offset_forecaster.1} parent=0 // pred_region
    _
  $region25: #{phase_offset_forecaster.1} parent=0 // pred_fallthru
    _
  // Predicated region
  $region26: #{phase_offset_forecaster.1} parent=0 // pred_check
    _
  $region27: #{phase_offset_forecaster.1} parent=0 // pred_check_branch
    %25 = sbr.rel (0) target = $region29
  $region28: #{phase_offset_forecaster.1} parent=0 // pred_region
    _
  $region29: #{phase_offset_forecaster.1} parent=0 // pred_fallthru
    _
  %v26 = vld [vmem:[%s0] sm:$0xff]
  %v27 = vld [vmem:[%s1] sm:$0xf]
  %v28 = vld [vmem:[%s2] sm:$0x1]
  %v30 = vlaneseq
  %v31 = vshrl.u32 %v30, 7
  %v32 = vsub.s32 0, %v31
  %v33 = vrot.slane %v28, %v32
  %vm35 = vcmask 31744
  %v37 = vsel %vm35, %v26, 0
  %vm39 = vcmask 1043456
  %v41 = vsel %vm39, %v27, 0
  %43 = vmatprep.subr.mxu0 0.0
  %44 = vmatpush1.msra.mxu0 %v41
  %45 = vmatprep.subr.mxu0 0.0
  %46 = vmatpush1.msra.mxu0 0.0
  %47 = vmatprep.subr.mxu0 0.0
  %48 = vmatpush1.msra.mxu0 0.0
  %49 = vmatprep.subr.mxu0 0.0
  %50 = vmatpush1.msra.mxu0 0.0
  %51 = vmatprep.subr.mxu0 0.0
  %52 = vmatpush1.msra.mxu0 0.0
  %53 = vmatprep.subr.mxu0 0.0
  %54 = vmatpush1.msra.mxu0 0.0
  %55 = vmatprep.subr.mxu0 0.0
  %56 = vmatpush1.msra.mxu0 0.0
  %57 = vmatprep.subr.mxu0 0.0
  %58 = vmatpush1.msra.mxu0 0.0
  %59 = vmatprep.subr.mxu0 0.0
  %60 = vmatpush1.msra.mxu0 0.0
  %61 = vmatprep.subr.mxu0 0.0
  %62 = vmatpush1.msra.mxu0 0.0
  %63 = vmatprep.subr.mxu0 0.0
  %64 = vmatpush1.msra.mxu0 0.0
  %65 = vmatprep.subr.mxu0 0.0
  %66 = vmatpush1.msra.mxu0 0.0
  %67 = vmatprep.subr.mxu0 0.0
  %68 = vmatpush1.msra.mxu0 0.0
  %69 = vmatprep.subr.mxu0 0.0
  %70 = vmatpush1.msra.mxu0 0.0
  %71 = vmatprep.subr.mxu0 0.0
  %72 = vmatpush1.msra.mxu0 0.0
  %73 = vmatprep.subr.mxu0 0.0
  %74 = vmatpush1.msra.mxu0 0.0
  %75 = vmatprep.subr.mxu0 0.0
  %76 = vmatpush1.msra.mxu0 0.0
  %77 = vmatprep.subr.mxu0 0.0
  %78 = vmatpush1.msra.mxu0 0.0
  %79 = vmatprep.subr.mxu0 0.0
  %80 = vmatpush1.msra.mxu0 0.0
  %81 = vmatprep.subr.mxu0 0.0
  %82 = vmatpush1.msra.mxu0 0.0
  %83 = vmatprep.subr.mxu0 0.0
  %84 = vmatpush1.msra.mxu0 0.0
  %85 = vmatprep.subr.mxu0 0.0
  %86 = vmatpush1.msra.mxu0 0.0
  %87 = vmatprep.subr.mxu0 0.0
  %88 = vmatpush1.msra.mxu0 0.0
  %89 = vmatprep.subr.mxu0 0.0
  %90 = vmatpush1.msra.mxu0 0.0
  %91 = vmatprep.subr.mxu0 0.0
  %92 = vmatpush1.msra.mxu0 0.0
  %93 = vmatprep.subr.mxu0 0.0
  %94 = vmatpush1.msra.mxu0 0.0
  %95 = vmatprep.subr.mxu0 0.0
  %96 = vmatpush1.msra.mxu0 0.0
  %97 = vmatprep.subr.mxu0 0.0
  %98 = vmatpush1.msra.mxu0 0.0
  %99 = vmatprep.subr.mxu0 0.0
  %100 = vmatpush1.msra.mxu0 0.0
  %101 = vmatprep.subr.mxu0 0.0
  %102 = vmatpush1.msra.mxu0 0.0
  %103 = vmatprep.subr.mxu0 0.0
  %104 = vmatpush1.msra.mxu0 0.0
  %105 = vmatprep.subr.mxu0 0.0
  %106 = vmatpush1.msra.mxu0 0.0
  %107 = vmatprep.mubr.f32.mxu0 0.0
  %108 = vmatmul.mubr.f32.gmra.mrb[0].mxu0 %v37
  %v109 = vpop.f32.mrb[0].mxu0
  %v110 = vadd.f32 %v33, %v109
  %v111 = vpop.f32.mrb[0].mxu0
  %112 = vdwg.mxu0
  %v113 = vmul.f32 %v110, 0.5
  %v114 = vmul.f32 %v110, 0.044715
  %v115 = vmul.f32 %v114, %v110
  %v116 = vmul.f32 %v115, %v110
  %v117 = vadd.f32 %v110, %v116
  %v118 = vmul.f32 %v117, 0.7978846
  %v119 = vtanh.pop %v118
  %v120 = vadd.f32 %v119, 1.0
  %v121 = vmul.f32 %v113, %v120
  %v122 = vlaneseq
  %v123 = vand.u32 %v122, 127
  %vm124 = vcmp.lt.s32.totalorder %v123, 64
  %v125 = vld [vmem:[%s3] sm:$0xff]
  %v126 = vld [vmem:[%s3 + $0x8] sm:$0xff]
  %v127 = vld [vmem:[%s3 + $0x10] sm:$0xff]
  %v128 = vld [vmem:[%s3 + $0x18] sm:$0xff]
  %v129 = vld [vmem:[%s3 + $0x20] sm:$0xff]
  %v130 = vld [vmem:[%s3 + $0x28] sm:$0xff]
  %v131 = vld [vmem:[%s3 + $0x30] sm:$0xff]
  %v132 = vld [vmem:[%s3 + $0x38] sm:$0xff]
  %v133 = vld [vmem:[%s3 + $0x40] sm:$0xff]
  %v134 = vld [vmem:[%s3 + $0x48] sm:$0xff]
  %v135 = vld [vmem:[%s3 + $0x50] sm:$0xff]
  %v136 = vld [vmem:[%s3 + $0x58] sm:$0xff]
  %v137 = vld [vmem:[%s3 + $0x60] sm:$0xff]
  %v138 = vld [vmem:[%s3 + $0x68] sm:$0xff]
  %v139 = vld [vmem:[%s3 + $0x70] sm:$0xff]
  %v140 = vld [vmem:[%s3 + $0x78] sm:$0xff]
  %v141 = vld [vmem:[%s4] sm:$0x1]
  %v143 = vlaneseq
  %v144 = vshrl.u32 %v143, 7
  %v145 = vsub.s32 0, %v144
  %v146 = vrot.slane %v141, %v145
  %148 = vmatprep.subr.mxu0 0.0
  %149 = vmatpush1.msra.mxu0 %v125
  %150 = vmatprep.subr.mxu0 0.0
  %151 = vmatpush1.msra.mxu0 %v126
  %152 = vmatprep.subr.mxu0 0.0
  %153 = vmatpush1.msra.mxu0 %v127
  %154 = vmatprep.subr.mxu0 0.0
  %155 = vmatpush1.msra.mxu0 %v128
  %156 = vmatprep.subr.mxu0 0.0
  %157 = vmatpush1.msra.mxu0 %v129
  %158 = vmatprep.subr.mxu0 0.0
  %159 = vmatpush1.msra.mxu0 %v130
  %160 = vmatprep.subr.mxu0 0.0
  %161 = vmatpush1.msra.mxu0 %v131
  %162 = vmatprep.subr.mxu0 0.0
  %163 = vmatpush1.msra.mxu0 %v132
  %164 = vmatprep.subr.mxu0 0.0
  %165 = vmatpush1.msra.mxu0 %v133
  %166 = vmatprep.subr.mxu0 0.0
  %167 = vmatpush1.msra.mxu0 %v134
  %168 = vmatprep.subr.mxu0 0.0
  %169 = vmatpush1.msra.mxu0 %v135
  %170 = vmatprep.subr.mxu0 0.0
  %171 = vmatpush1.msra.mxu0 %v136
  %172 = vmatprep.subr.mxu0 0.0
  %173 = vmatpush1.msra.mxu0 %v137
  %174 = vmatprep.subr.mxu0 0.0
  %175 = vmatpush1.msra.mxu0 %v138
  %176 = vmatprep.subr.mxu0 0.0
  %177 = vmatpush1.msra.mxu0 %v139
  %178 = vmatprep.subr.mxu0 0.0
  %179 = vmatpush1.msra.mxu0 %v140
  %180 = vmatprep.subr.mxu0 0.0
  %181 = vmatpush1.msra.mxu0 0.0
  %182 = vmatprep.subr.mxu0 0.0
  %183 = vmatpush1.msra.mxu0 0.0
  %184 = vmatprep.subr.mxu0 0.0
  %185 = vmatpush1.msra.mxu0 0.0
  %186 = vmatprep.subr.mxu0 0.0
  %187 = vmatpush1.msra.mxu0 0.0
  %188 = vmatprep.subr.mxu0 0.0
  %189 = vmatpush1.msra.mxu0 0.0
  %190 = vmatprep.subr.mxu0 0.0
  %191 = vmatpush1.msra.mxu0 0.0
  %192 = vmatprep.subr.mxu0 0.0
  %193 = vmatpush1.msra.mxu0 0.0
  %194 = vmatprep.subr.mxu0 0.0
  %195 = vmatpush1.msra.mxu0 0.0
  %196 = vmatprep.subr.mxu0 0.0
  %197 = vmatpush1.msra.mxu0 0.0
  %198 = vmatprep.subr.mxu0 0.0
  %199 = vmatpush1.msra.mxu0 0.0
  %200 = vmatprep.subr.mxu0 0.0
  %201 = vmatpush1.msra.mxu0 0.0
  %202 = vmatprep.subr.mxu0 0.0
  %203 = vmatpush1.msra.mxu0 0.0
  %204 = vmatprep.subr.mxu0 0.0
  %205 = vmatpush1.msra.mxu0 0.0
  %206 = vmatprep.subr.mxu0 0.0
  %207 = vmatpush1.msra.mxu0 0.0
  %208 = vmatprep.subr.mxu0 0.0
  %209 = vmatpush1.msra.mxu0 0.0
  %210 = vmatprep.subr.mxu0 0.0
  %211 = vmatpush1.msra.mxu0 0.0
  %212 = vmatprep.mubr.f32.mxu0 0.0
  %213 = vmatmul.mubr.f32.gmra.mrb[0].mxu0 %v121
  %v214 = vpop.f32.mrb[0].mxu0
  %v215 = vadd.f32 %v146, %v214
  %v216 = vpop.f32.mrb[0].mxu0
  %217 = vdwg.mxu0
  %v218 = vand.u32 2147483647, %v215
  %vm219 = vcmp.le.f32.partialorder %v218, 0.7853982
  %vm220 = vcmp.lt.s32.totalorder %v215, 0
  %v221 = vand.u32 %v215, 2139095040
  %v222 = vshrl.u32 %v221, 23
  %v223 = vsub.s32 %v222, 127
  %v224 = vand.u32 2147483647, %v215
  %v225 = vand.u32 %v224, 8388607
  %v226 = vor.u32 %v225, 8388608
  %v227 = vsub.s32 0, %v226
  %v228 = vadd.s32 %v223, 1
  %vm229 = vcmp.gt.s32.totalorder %v228, 0
  %v230 = vsel %vm229, %v228, 0
  %v231 = vshrl.u32 %v230, 5
  %v232 = vand.u32 %v230, 31
  %v233 = vsub.s32 32, %v232
  %v234 = vshrl.u32 683565275, %v233
  %v235 = vshll.u32 683565275, %v232
  %v236 = vshrl.u32 2475754826, %v233
  %v237 = vor.u32 %v235, %v236
  %v238 = vshll.u32 2475754826, %v232
  %v239 = vshrl.u32 2131351028, %v233
  %v240 = vor.u32 %v238, %v239
  %v241 = vshll.u32 2131351028, %v232
  %v242 = vshrl.u32 2102212464, %v233
  %v243 = vor.u32 %v241, %v242
  %v244 = vshll.u32 2102212464, %v232
  %v245 = vshrl.u32 920167782, %v233
  %v246 = vor.u32 %v244, %v245
  %v247 = vshll.u32 920167782, %v232
  %v248 = vshrl.u32 1326507024, %v233
  %v249 = vor.u32 %v247, %v248
  %vm250 = vcmp.lt.s32.totalorder %v231, 1
  %vm251 = vcmp.lt.s32.totalorder %v231, 2
  %vm252 = vcmp.lt.s32.totalorder %v231, 3
  %vm253 = vcmp.lt.s32.totalorder %v231, 4
  %v254 = vsel %vm250, %v234, %v237
  %v255 = vsel %vm253, %v243, 2102212464
  %v256 = vsel %vm252, %v240, %v255
  %v257 = vsel %vm251, %v254, %v256
  %v258 = vsel %vm250, %v237, %v240
  %v259 = vsel %vm253, %v246, 920167782
  %v260 = vsel %vm252, %v243, %v259
  %v261 = vsel %vm251, %v258, %v260
  %v262 = vsel %vm250, %v240, %v243
  %v263 = vsel %vm253, %v249, 1326507024
  %v264 = vsel %vm252, %v246, %v263
  %v265 = vsel %vm251, %v262, %v264
  %v266 = vshll.u32 %v226, 8
  %v267 = vmul.u32.u64.compose %v266, %v265
  %v268 = vextract.low.u32 %v267
  %v269 = vextract.high.u32 %v267
  %v270 = vmul.u32.u64.compose %v266, %v261
  %v271 = vextract.low.u32 %v270
  %v272 = vextract.high.u32 %v270
  %v273 = vmul.u32 %v266, %v257
  %v274 = vadd.s32 %v269, %v271
  %vm275 = vc.u32 %v269, %v271
  %v276 = vadd.s32 %v272, 1
  %v277 = vsel %vm275, %v276, %v272
  %v278 = vadd.s32 %v273, %v277
  %v279 = vadd.s32 %v278, 536870912
  %v280 = vshrl.u32 %v279, 30
  %v281 = vshll.u32 %v280, 30
  %v282 = vsub.s32 %v278, %v281
  %vm283 = vcmp.lt.s32.totalorder %v282, 0
  %v284 = vsub.s32 0, %v282
  %v285 = vsel %vm283, %v284, %v282
  %v286 = vclz %v285
  %v287 = vsub.s32 %v286, 2
  %vm288 = vcmp.gt.s32.totalorder 0, %v287
  %v289 = vsel %vm288, 0, %v287
  %v290 = vsub.s32 32, %v289
  %v291 = vshll.u32 %v282, %v289
  %v292 = vshrl.u32 %v274, %v290
  %v293 = vor.u32 %v291, %v292
  %v294 = vsub.s32 4294967266, %v289
  %v295 = vadd.s32 %v294, 127
  %v296 = vshll.u32 %v295, 23
  %v297 = vor.u32 4788187, %v296
  %v298 = vand.u32 2147483647, %v297
  %v300 = vcvt.s32.f32 %v293
  %v301 = vmul.f32 %v300, %v298
  %v302 = vxor.u32 %v301, 2147483648
  %v303 = vsel %vm220, %v302, %v301
  %v304 = vsub.s32 4, %v280
  %v305 = vsel %vm220, %v304, %v280
  %v306 = vsel %vm219, %v215, %v303
  %v307 = vsel %vm219, 0, %v305
  %v308 = vcosq.f32.pop %v306
  %v309 = vsinq.f32.pop %v306
  %vm310 = vweird.f32 %v215
  %v311 = vand.u32 %v307, 3
  %vm312 = vcmp.lt.s32.totalorder %v311, 2
  %vm313 = vcmp.eq.s32.totalorder %v311, 0
  %v314 = vxor.u32 %v309, 2147483648
  %v315 = vsel %vm313, %v308, %v314
  %vm316 = vcmp.eq.s32.totalorder %v311, 2
  %v317 = vxor.u32 %v308, 2147483648
  %v318 = vsel %vm316, %v317, %v309
  %v319 = vsel %vm312, %v315, %v318
  %v320 = vsel %vm310, nan, %v319
  %v321 = vmul.f32 %v215, 0.5
  %v322 = vmul.f32 %v215, 0.044715
  %v323 = vmul.f32 %v322, %v215
  %v324 = vmul.f32 %v323, %v215
  %v325 = vadd.f32 %v215, %v324
  %v326 = vmul.f32 %v325, 0.7978846
  %v327 = vtanh.pop %v326
  %v328 = vadd.f32 %v327, 1.0
  %v329 = vmul.f32 %v321, %v328
  %v330 = vsel %vm124, 1, 0
  %vm331 = vcmp.eq.s32.totalorder %v330, 1
  %v332 = vsel %vm331, %v320, %v329
  %s333 = scalar_lea.vmem %s3, 128
  %v334 = vld [vmem:[%s333] sm:$0xff]
  %v335 = vld [vmem:[%s333 + $0x8] sm:$0xff]
  %v336 = vld [vmem:[%s333 + $0x10] sm:$0xff]
  %v337 = vld [vmem:[%s333 + $0x18] sm:$0xff]
  %v338 = vld [vmem:[%s333 + $0x20] sm:$0xff]
  %v339 = vld [vmem:[%s333 + $0x28] sm:$0xff]
  %v340 = vld [vmem:[%s333 + $0x30] sm:$0xff]
  %v341 = vld [vmem:[%s333 + $0x38] sm:$0xff]
  %v342 = vld [vmem:[%s333 + $0x40] sm:$0xff]
  %v343 = vld [vmem:[%s333 + $0x48] sm:$0xff]
  %v344 = vld [vmem:[%s333 + $0x50] sm:$0xff]
  %v345 = vld [vmem:[%s333 + $0x58] sm:$0xff]
  %v346 = vld [vmem:[%s333 + $0x60] sm:$0xff]
  %v347 = vld [vmem:[%s333 + $0x68] sm:$0xff]
  %v348 = vld [vmem:[%s333 + $0x70] sm:$0xff]
  %v349 = vld [vmem:[%s333 + $0x78] sm:$0xff]
  %s350 = scalar_lea.vmem %s4, 1
  %v351 = vld [vmem:[%s350] sm:$0x1]
  %v353 = vlaneseq
  %v354 = vshrl.u32 %v353, 7
  %v355 = vsub.s32 0, %v354
  %v356 = vrot.slane %v351, %v355
  %358 = vmatprep.subr.mxu0 0.0
  %359 = vmatpush1.msra.mxu0 %v334
  %360 = vmatprep.subr.mxu0 0.0
  %361 = vmatpush1.msra.mxu0 %v335
  %362 = vmatprep.subr.mxu0 0.0
  %363 = vmatpush1.msra.mxu0 %v336
  %364 = vmatprep.subr.mxu0 0.0
  %365 = vmatpush1.msra.mxu0 %v337
  %366 = vmatprep.subr.mxu0 0.0
  %367 = vmatpush1.msra.mxu0 %v338
  %368 = vmatprep.subr.mxu0 0.0
  %369 = vmatpush1.msra.mxu0 %v339
  %370 = vmatprep.subr.mxu0 0.0
  %371 = vmatpush1.msra.mxu0 %v340
  %372 = vmatprep.subr.mxu0 0.0
  %373 = vmatpush1.msra.mxu0 %v341
  %374 = vmatprep.subr.mxu0 0.0
  %375 = vmatpush1.msra.mxu0 %v342
  %376 = vmatprep.subr.mxu0 0.0
  %377 = vmatpush1.msra.mxu0 %v343
  %378 = vmatprep.subr.mxu0 0.0
  %379 = vmatpush1.msra.mxu0 %v344
  %380 = vmatprep.subr.mxu0 0.0
  %381 = vmatpush1.msra.mxu0 %v345
  %382 = vmatprep.subr.mxu0 0.0
  %383 = vmatpush1.msra.mxu0 %v346
  %384 = vmatprep.subr.mxu0 0.0
  %385 = vmatpush1.msra.mxu0 %v347
  %386 = vmatprep.subr.mxu0 0.0
  %387 = vmatpush1.msra.mxu0 %v348
  %388 = vmatprep.subr.mxu0 0.0
  %389 = vmatpush1.msra.mxu0 %v349
  %390 = vmatprep.subr.mxu0 0.0
  %391 = vmatpush1.msra.mxu0 0.0
  %392 = vmatprep.subr.mxu0 0.0
  %393 = vmatpush1.msra.mxu0 0.0
  %394 = vmatprep.subr.mxu0 0.0
  %395 = vmatpush1.msra.mxu0 0.0
  %396 = vmatprep.subr.mxu0 0.0
  %397 = vmatpush1.msra.mxu0 0.0
  %398 = vmatprep.subr.mxu0 0.0
  %399 = vmatpush1.msra.mxu0 0.0
  %400 = vmatprep.subr.mxu0 0.0
  %401 = vmatpush1.msra.mxu0 0.0
  %402 = vmatprep.subr.mxu0 0.0
  %403 = vmatpush1.msra.mxu0 0.0
  %404 = vmatprep.subr.mxu0 0.0
  %405 = vmatpush1.msra.mxu0 0.0
  %406 = vmatprep.subr.mxu0 0.0
  %407 = vmatpush1.msra.mxu0 0.0
  %408 = vmatprep.subr.mxu0 0.0
  %409 = vmatpush1.msra.mxu0 0.0
  %410 = vmatprep.subr.mxu0 0.0
  %411 = vmatpush1.msra.mxu0 0.0
  %412 = vmatprep.subr.mxu0 0.0
  %413 = vmatpush1.msra.mxu0 0.0
  %414 = vmatprep.subr.mxu0 0.0
  %415 = vmatpush1.msra.mxu0 0.0
  %416 = vmatprep.subr.mxu0 0.0
  %417 = vmatpush1.msra.mxu0 0.0
  %418 = vmatprep.subr.mxu0 0.0
  %419 = vmatpush1.msra.mxu0 0.0
  %420 = vmatprep.subr.mxu0 0.0
  %421 = vmatpush1.msra.mxu0 0.0
  %422 = vmatprep.mubr.f32.mxu0 0.0
  %423 = vmatmul.mubr.f32.gmra.mrb[0].mxu0 %v332
  %v424 = vpop.f32.mrb[0].mxu0
  %v425 = vadd.f32 %v356, %v424
  %v426 = vpop.f32.mrb[0].mxu0
  %427 = vdwg.mxu0
  %v428 = vand.u32 2147483647, %v425
  %vm429 = vcmp.le.f32.partialorder %v428, 0.7853982
  %vm430 = vcmp.lt.s32.totalorder %v425, 0
  %v431 = vand.u32 %v425, 2139095040
  %v432 = vshrl.u32 %v431, 23
  %v433 = vsub.s32 %v432, 127
  %v434 = vand.u32 2147483647, %v425
  %v435 = vand.u32 %v434, 8388607
  %v436 = vor.u32 %v435, 8388608
  %v437 = vsub.s32 0, %v436
  %v438 = vadd.s32 %v433, 1
  %vm439 = vcmp.gt.s32.totalorder %v438, 0
  %v440 = vsel %vm439, %v438, 0
  %v441 = vshrl.u32 %v440, 5
  %v442 = vand.u32 %v440, 31
  %v443 = vsub.s32 32, %v442
  %v444 = vshrl.u32 683565275, %v443
  %v445 = vshll.u32 683565275, %v442
  %v446 = vshrl.u32 2475754826, %v443
  %v447 = vor.u32 %v445, %v446
  %v448 = vshll.u32 2475754826, %v442
  %v449 = vshrl.u32 2131351028, %v443
  %v450 = vor.u32 %v448, %v449
  %v451 = vshll.u32 2131351028, %v442
  %v452 = vshrl.u32 2102212464, %v443
  %v453 = vor.u32 %v451, %v452
  %v454 = vshll.u32 2102212464, %v442
  %v455 = vshrl.u32 920167782, %v443
  %v456 = vor.u32 %v454, %v455
  %v457 = vshll.u32 920167782, %v442
  %v458 = vshrl.u32 1326507024, %v443
  %v459 = vor.u32 %v457, %v458
  %vm460 = vcmp.lt.s32.totalorder %v441, 1
  %vm461 = vcmp.lt.s32.totalorder %v441, 2
  %vm462 = vcmp.lt.s32.totalorder %v441, 3
  %vm463 = vcmp.lt.s32.totalorder %v441, 4
  %v464 = vsel %vm460, %v444, %v447
  %v465 = vsel %vm463, %v453, 2102212464
  %v466 = vsel %vm462, %v450, %v465
  %v467 = vsel %vm461, %v464, %v466
  %v468 = vsel %vm460, %v447, %v450
  %v469 = vsel %vm463, %v456, 920167782
  %v470 = vsel %vm462, %v453, %v469
  %v471 = vsel %vm461, %v468, %v470
  %v472 = vsel %vm460, %v450, %v453
  %v473 = vsel %vm463, %v459, 1326507024
  %v474 = vsel %vm462, %v456, %v473
  %v475 = vsel %vm461, %v472, %v474
  %v476 = vshll.u32 %v436, 8
  %v477 = vmul.u32.u64.compose %v476, %v475
  %v478 = vextract.low.u32 %v477
  %v479 = vextract.high.u32 %v477
  %v480 = vmul.u32.u64.compose %v476, %v471
  %v481 = vextract.low.u32 %v480
  %v482 = vextract.high.u32 %v480
  %v483 = vmul.u32 %v476, %v467
  %v484 = vadd.s32 %v479, %v481
  %vm485 = vc.u32 %v479, %v481
  %v486 = vadd.s32 %v482, 1
  %v487 = vsel %vm485, %v486, %v482
  %v488 = vadd.s32 %v483, %v487
  %v489 = vadd.s32 %v488, 536870912
  %v490 = vshrl.u32 %v489, 30
  %v491 = vshll.u32 %v490, 30
  %v492 = vsub.s32 %v488, %v491
  %vm493 = vcmp.lt.s32.totalorder %v492, 0
  %v494 = vsub.s32 0, %v492
  %v495 = vsel %vm493, %v494, %v492
  %v496 = vclz %v495
  %v497 = vsub.s32 %v496, 2
  %vm498 = vcmp.gt.s32.totalorder 0, %v497
  %v499 = vsel %vm498, 0, %v497
  %v500 = vsub.s32 32, %v499
  %v501 = vshll.u32 %v492, %v499
  %v502 = vshrl.u32 %v484, %v500
  %v503 = vor.u32 %v501, %v502
  %v504 = vsub.s32 4294967266, %v499
  %v505 = vadd.s32 %v504, 127
  %v506 = vshll.u32 %v505, 23
  %v507 = vor.u32 4788187, %v506
  %v508 = vand.u32 2147483647, %v507
  %v510 = vcvt.s32.f32 %v503
  %v511 = vmul.f32 %v510, %v508
  %v512 = vxor.u32 %v511, 2147483648
  %v513 = vsel %vm430, %v512, %v511
  %v514 = vsub.s32 4, %v490
  %v515 = vsel %vm430, %v514, %v490
  %v516 = vsel %vm429, %v425, %v513
  %v517 = vsel %vm429, 0, %v515
  %v518 = vcosq.f32.pop %v516
  %v519 = vsinq.f32.pop %v516
  %vm520 = vweird.f32 %v425
  %v521 = vand.u32 %v517, 3
  %vm522 = vcmp.lt.s32.totalorder %v521, 2
  %vm523 = vcmp.eq.s32.totalorder %v521, 0
  %v524 = vxor.u32 %v519, 2147483648
  %v525 = vsel %vm523, %v518, %v524
  %vm526 = vcmp.eq.s32.totalorder %v521, 2
  %v527 = vxor.u32 %v518, 2147483648
  %v528 = vsel %vm526, %v527, %v519
  %v529 = vsel %vm522, %v525, %v528
  %v530 = vsel %vm520, nan, %v529
  %v531 = vmul.f32 %v425, 0.5
  %v532 = vmul.f32 %v425, 0.044715
  %v533 = vmul.f32 %v532, %v425
  %v534 = vmul.f32 %v533, %v425
  %v535 = vadd.f32 %v425, %v534
  %v536 = vmul.f32 %v535, 0.7978846
  %v537 = vtanh.pop %v536
  %v538 = vadd.f32 %v537, 1.0
  %v539 = vmul.f32 %v531, %v538
  %v540 = vsel %vm331, %v530, %v539
  %s541 = scalar_lea.vmem %s3, 256
  %v542 = vld [vmem:[%s541] sm:$0xff]
  %v543 = vld [vmem:[%s541 + $0x8] sm:$0xff]
  %v544 = vld [vmem:[%s541 + $0x10] sm:$0xff]
  %v545 = vld [vmem:[%s541 + $0x18] sm:$0xff]
  %v546 = vld [vmem:[%s541 + $0x20] sm:$0xff]
  %v547 = vld [vmem:[%s541 + $0x28] sm:$0xff]
  %v548 = vld [vmem:[%s541 + $0x30] sm:$0xff]
  %v549 = vld [vmem:[%s541 + $0x38] sm:$0xff]
  %v550 = vld [vmem:[%s541 + $0x40] sm:$0xff]
  %v551 = vld [vmem:[%s541 + $0x48] sm:$0xff]
  %v552 = vld [vmem:[%s541 + $0x50] sm:$0xff]
  %v553 = vld [vmem:[%s541 + $0x58] sm:$0xff]
  %v554 = vld [vmem:[%s541 + $0x60] sm:$0xff]
  %v555 = vld [vmem:[%s541 + $0x68] sm:$0xff]
  %v556 = vld [vmem:[%s541 + $0x70] sm:$0xff]
  %v557 = vld [vmem:[%s541 + $0x78] sm:$0xff]
  %s558 = scalar_lea.vmem %s4, 2
  %v559 = vld [vmem:[%s558] sm:$0x1]
  %v561 = vlaneseq
  %v562 = vshrl.u32 %v561, 7
  %v563 = vsub.s32 0, %v562
  %v564 = vrot.slane %v559, %v563
  %566 = vmatprep.subr.mxu0 0.0
  %567 = vmatpush1.msra.mxu0 %v542
  %568 = vmatprep.subr.mxu0 0.0
  %569 = vmatpush1.msra.mxu0 %v543
  %570 = vmatprep.subr.mxu0 0.0
  %571 = vmatpush1.msra.mxu0 %v544
  %572 = vmatprep.subr.mxu0 0.0
  %573 = vmatpush1.msra.mxu0 %v545
  %574 = vmatprep.subr.mxu0 0.0
  %575 = vmatpush1.msra.mxu0 %v546
  %576 = vmatprep.subr.mxu0 0.0
  %577 = vmatpush1.msra.mxu0 %v547
  %578 = vmatprep.subr.mxu0 0.0
  %579 = vmatpush1.msra.mxu0 %v548
  %580 = vmatprep.subr.mxu0 0.0
  %581 = vmatpush1.msra.mxu0 %v549
  %582 = vmatprep.subr.mxu0 0.0
  %583 = vmatpush1.msra.mxu0 %v550
  %584 = vmatprep.subr.mxu0 0.0
  %585 = vmatpush1.msra.mxu0 %v551
  %586 = vmatprep.subr.mxu0 0.0
  %587 = vmatpush1.msra.mxu0 %v552
  %588 = vmatprep.subr.mxu0 0.0
  %589 = vmatpush1.msra.mxu0 %v553
  %590 = vmatprep.subr.mxu0 0.0
  %591 = vmatpush1.msra.mxu0 %v554
  %592 = vmatprep.subr.mxu0 0.0
  %593 = vmatpush1.msra.mxu0 %v555
  %594 = vmatprep.subr.mxu0 0.0
  %595 = vmatpush1.msra.mxu0 %v556
  %596 = vmatprep.subr.mxu0 0.0
  %597 = vmatpush1.msra.mxu0 %v557
  %598 = vmatprep.subr.mxu0 0.0
  %599 = vmatpush1.msra.mxu0 0.0
  %600 = vmatprep.subr.mxu0 0.0
  %601 = vmatpush1.msra.mxu0 0.0
  %602 = vmatprep.subr.mxu0 0.0
  %603 = vmatpush1.msra.mxu0 0.0
  %604 = vmatprep.subr.mxu0 0.0
  %605 = vmatpush1.msra.mxu0 0.0
  %606 = vmatprep.subr.mxu0 0.0
  %607 = vmatpush1.msra.mxu0 0.0
  %608 = vmatprep.subr.mxu0 0.0
  %609 = vmatpush1.msra.mxu0 0.0
  %610 = vmatprep.subr.mxu0 0.0
  %611 = vmatpush1.msra.mxu0 0.0
  %612 = vmatprep.subr.mxu0 0.0
  %613 = vmatpush1.msra.mxu0 0.0
  %614 = vmatprep.subr.mxu0 0.0
  %615 = vmatpush1.msra.mxu0 0.0
  %616 = vmatprep.subr.mxu0 0.0
  %617 = vmatpush1.msra.mxu0 0.0
  %618 = vmatprep.subr.mxu0 0.0
  %619 = vmatpush1.msra.mxu0 0.0
  %620 = vmatprep.subr.mxu0 0.0
  %621 = vmatpush1.msra.mxu0 0.0
  %622 = vmatprep.subr.mxu0 0.0
  %623 = vmatpush1.msra.mxu0 0.0
  %624 = vmatprep.subr.mxu0 0.0
  %625 = vmatpush1.msra.mxu0 0.0
  %626 = vmatprep.subr.mxu0 0.0
  %627 = vmatpush1.msra.mxu0 0.0
  %628 = vmatprep.subr.mxu0 0.0
  %629 = vmatpush1.msra.mxu0 0.0
  %630 = vmatprep.mubr.f32.mxu0 0.0
  %631 = vmatmul.mubr.f32.gmra.mrb[0].mxu0 %v540
  %v632 = vpop.f32.mrb[0].mxu0
  %v633 = vadd.f32 %v564, %v632
  %v634 = vpop.f32.mrb[0].mxu0
  %635 = vdwg.mxu0
  %v636 = vand.u32 2147483647, %v633
  %vm637 = vcmp.le.f32.partialorder %v636, 0.7853982
  %vm638 = vcmp.lt.s32.totalorder %v633, 0
  %v639 = vand.u32 %v633, 2139095040
  %v640 = vshrl.u32 %v639, 23
  %v641 = vsub.s32 %v640, 127
  %v642 = vand.u32 2147483647, %v633
  %v643 = vand.u32 %v642, 8388607
  %v644 = vor.u32 %v643, 8388608
  %v645 = vsub.s32 0, %v644
  %v646 = vadd.s32 %v641, 1
  %vm647 = vcmp.gt.s32.totalorder %v646, 0
  %v648 = vsel %vm647, %v646, 0
  %v649 = vshrl.u32 %v648, 5
  %v650 = vand.u32 %v648, 31
  %v651 = vsub.s32 32, %v650
  %v652 = vshrl.u32 683565275, %v651
  %v653 = vshll.u32 683565275, %v650
  %v654 = vshrl.u32 2475754826, %v651
  %v655 = vor.u32 %v653, %v654
  %v656 = vshll.u32 2475754826, %v650
  %v657 = vshrl.u32 2131351028, %v651
  %v658 = vor.u32 %v656, %v657
  %v659 = vshll.u32 2131351028, %v650
  %v660 = vshrl.u32 2102212464, %v651
  %v661 = vor.u32 %v659, %v660
  %v662 = vshll.u32 2102212464, %v650
  %v663 = vshrl.u32 920167782, %v651
  %v664 = vor.u32 %v662, %v663
  %v665 = vshll.u32 920167782, %v650
  %v666 = vshrl.u32 1326507024, %v651
  %v667 = vor.u32 %v665, %v666
  %vm668 = vcmp.lt.s32.totalorder %v649, 1
  %vm669 = vcmp.lt.s32.totalorder %v649, 2
  %vm670 = vcmp.lt.s32.totalorder %v649, 3
  %vm671 = vcmp.lt.s32.totalorder %v649, 4
  %v672 = vsel %vm668, %v652, %v655
  %v673 = vsel %vm671, %v661, 2102212464
  %v674 = vsel %vm670, %v658, %v673
  %v675 = vsel %vm669, %v672, %v674
  %v676 = vsel %vm668, %v655, %v658
  %v677 = vsel %vm671, %v664, 920167782
  %v678 = vsel %vm670, %v661, %v677
  %v679 = vsel %vm669, %v676, %v678
  %v680 = vsel %vm668, %v658, %v661
  %v681 = vsel %vm671, %v667, 1326507024
  %v682 = vsel %vm670, %v664, %v681
  %v683 = vsel %vm669, %v680, %v682
  %v684 = vshll.u32 %v644, 8
  %v685 = vmul.u32.u64.compose %v684, %v683
  %v686 = vextract.low.u32 %v685
  %v687 = vextract.high.u32 %v685
  %v688 = vmul.u32.u64.compose %v684, %v679
  %v689 = vextract.low.u32 %v688
  %v690 = vextract.high.u32 %v688
  %v691 = vmul.u32 %v684, %v675
  %v692 = vadd.s32 %v687, %v689
  %vm693 = vc.u32 %v687, %v689
  %v694 = vadd.s32 %v690, 1
  %v695 = vsel %vm693, %v694, %v690
  %v696 = vadd.s32 %v691, %v695
  %v697 = vadd.s32 %v696, 536870912
  %v698 = vshrl.u32 %v697, 30
  %v699 = vshll.u32 %v698, 30
  %v700 = vsub.s32 %v696, %v699
  %vm701 = vcmp.lt.s32.totalorder %v700, 0
  %v702 = vsub.s32 0, %v700
  %v703 = vsel %vm701, %v702, %v700
  %v704 = vclz %v703
  %v705 = vsub.s32 %v704, 2
  %vm706 = vcmp.gt.s32.totalorder 0, %v705
  %v707 = vsel %vm706, 0, %v705
  %v708 = vsub.s32 32, %v707
  %v709 = vshll.u32 %v700, %v707
  %v710 = vshrl.u32 %v692, %v708
  %v711 = vor.u32 %v709, %v710
  %v712 = vsub.s32 4294967266, %v707
  %v713 = vadd.s32 %v712, 127
  %v714 = vshll.u32 %v713, 23
  %v715 = vor.u32 4788187, %v714
  %v716 = vand.u32 2147483647, %v715
  %v718 = vcvt.s32.f32 %v711
  %v719 = vmul.f32 %v718, %v716
  %v720 = vxor.u32 %v719, 2147483648
  %v721 = vsel %vm638, %v720, %v719
  %v722 = vsub.s32 4, %v698
  %v723 = vsel %vm638, %v722, %v698
  %v724 = vsel %vm637, %v633, %v721
  %v725 = vsel %vm637, 0, %v723
  %v726 = vcosq.f32.pop %v724
  %v727 = vsinq.f32.pop %v724
  %vm728 = vweird.f32 %v633
  %v729 = vand.u32 %v725, 3
  %vm730 = vcmp.lt.s32.totalorder %v729, 2
  %vm731 = vcmp.eq.s32.totalorder %v729, 0
  %v732 = vxor.u32 %v727, 2147483648
  %v733 = vsel %vm731, %v726, %v732
  %vm734 = vcmp.eq.s32.totalorder %v729, 2
  %v735 = vxor.u32 %v726, 2147483648
  %v736 = vsel %vm734, %v735, %v727
  %v737 = vsel %vm730, %v733, %v736
  %v738 = vsel %vm728, nan, %v737
  %v739 = vmul.f32 %v633, 0.5
  %v740 = vmul.f32 %v633, 0.044715
  %v741 = vmul.f32 %v740, %v633
  %v742 = vmul.f32 %v741, %v633
  %v743 = vadd.f32 %v633, %v742
  %v744 = vmul.f32 %v743, 0.7978846
  %v745 = vtanh.pop %v744
  %v746 = vadd.f32 %v745, 1.0
  %v747 = vmul.f32 %v739, %v746
  %v748 = vsel %vm331, %v738, %v747
  %v749 = vld [vmem:[%s5] sm:$0xff]
  %v750 = vld [vmem:[%s5 + $0x8] sm:$0xff]
  %v751 = vld [vmem:[%s5 + $0x10] sm:$0xff]
  %v752 = vld [vmem:[%s5 + $0x18] sm:$0xff]
  %v753 = vld [vmem:[%s5 + $0x20] sm:$0xff]
  %v754 = vld [vmem:[%s5 + $0x28] sm:$0xff]
  %v755 = vld [vmem:[%s5 + $0x30] sm:$0xff]
  %v756 = vld [vmem:[%s5 + $0x38] sm:$0xff]
  %v757 = vld [vmem:[%s5 + $0x40] sm:$0xff]
  %v758 = vld [vmem:[%s5 + $0x48] sm:$0xff]
  %v759 = vld [vmem:[%s5 + $0x50] sm:$0xff]
  %v760 = vld [vmem:[%s5 + $0x58] sm:$0xff]
  %v761 = vld [vmem:[%s5 + $0x60] sm:$0xff]
  %v762 = vld [vmem:[%s5 + $0x68] sm:$0xff]
  %v763 = vld [vmem:[%s5 + $0x70] sm:$0xff]
  %v764 = vld [vmem:[%s5 + $0x78] sm:$0xff]
  %v765 = vld [vmem:[%s6] sm:$0x1]
  %v767 = vlaneseq
  %v768 = vshrl.u32 %v767, 7
  %v769 = vsub.s32 0, %v768
  %v770 = vrot.slane %v765, %v769
  %772 = vmatprep.subr.mxu0 0.0
  %773 = vmatpush1.msra.mxu0 %v749
  %774 = vmatprep.subr.mxu0 0.0
  %775 = vmatpush1.msra.mxu0 %v750
  %776 = vmatprep.subr.mxu0 0.0
  %777 = vmatpush1.msra.mxu0 %v751
  %778 = vmatprep.subr.mxu0 0.0
  %779 = vmatpush1.msra.mxu0 %v752
  %780 = vmatprep.subr.mxu0 0.0
  %781 = vmatpush1.msra.mxu0 %v753
  %782 = vmatprep.subr.mxu0 0.0
  %783 = vmatpush1.msra.mxu0 %v754
  %784 = vmatprep.subr.mxu0 0.0
  %785 = vmatpush1.msra.mxu0 %v755
  %786 = vmatprep.subr.mxu0 0.0
  %787 = vmatpush1.msra.mxu0 %v756
  %788 = vmatprep.subr.mxu0 0.0
  %789 = vmatpush1.msra.mxu0 %v757
  %790 = vmatprep.subr.mxu0 0.0
  %791 = vmatpush1.msra.mxu0 %v758
  %792 = vmatprep.subr.mxu0 0.0
  %793 = vmatpush1.msra.mxu0 %v759
  %794 = vmatprep.subr.mxu0 0.0
  %795 = vmatpush1.msra.mxu0 %v760
  %796 = vmatprep.subr.mxu0 0.0
  %797 = vmatpush1.msra.mxu0 %v761
  %798 = vmatprep.subr.mxu0 0.0
  %799 = vmatpush1.msra.mxu0 %v762
  %800 = vmatprep.subr.mxu0 0.0
  %801 = vmatpush1.msra.mxu0 %v763
  %802 = vmatprep.subr.mxu0 0.0
  %803 = vmatpush1.msra.mxu0 %v764
  %804 = vmatprep.subr.mxu0 0.0
  %805 = vmatpush1.msra.mxu0 0.0
  %806 = vmatprep.subr.mxu0 0.0
  %807 = vmatpush1.msra.mxu0 0.0
  %808 = vmatprep.subr.mxu0 0.0
  %809 = vmatpush1.msra.mxu0 0.0
  %810 = vmatprep.subr.mxu0 0.0
  %811 = vmatpush1.msra.mxu0 0.0
  %812 = vmatprep.subr.mxu0 0.0
  %813 = vmatpush1.msra.mxu0 0.0
  %814 = vmatprep.subr.mxu0 0.0
  %815 = vmatpush1.msra.mxu0 0.0
  %816 = vmatprep.subr.mxu0 0.0
  %817 = vmatpush1.msra.mxu0 0.0
  %818 = vmatprep.subr.mxu0 0.0
  %819 = vmatpush1.msra.mxu0 0.0
  %820 = vmatprep.subr.mxu0 0.0
  %821 = vmatpush1.msra.mxu0 0.0
  %822 = vmatprep.subr.mxu0 0.0
  %823 = vmatpush1.msra.mxu0 0.0
  %824 = vmatprep.subr.mxu0 0.0
  %825 = vmatpush1.msra.mxu0 0.0
  %826 = vmatprep.subr.mxu0 0.0
  %827 = vmatpush1.msra.mxu0 0.0
  %828 = vmatprep.subr.mxu0 0.0
  %829 = vmatpush1.msra.mxu0 0.0
  %830 = vmatprep.subr.mxu0 0.0
  %831 = vmatpush1.msra.mxu0 0.0
  %832 = vmatprep.subr.mxu0 0.0
  %833 = vmatpush1.msra.mxu0 0.0
  %834 = vmatprep.subr.mxu0 0.0
  %835 = vmatpush1.msra.mxu0 0.0
  %836 = vmatprep.mubr.f32.mxu0 0.0
  %837 = vmatmul.mubr.f32.gmra.mrb[0].mxu0 %v748
  %v838 = vpop.f32.mrb[0].mxu0
  %v839 = vadd.f32 %v770, %v838
  %v840 = vpop.f32.mrb[0].mxu0
  %841 = vdwg.mxu0
  %842 = vst [vmem:[%s7] sm:$0xff] %v839
  // Predicated region
  $region30: #{phase_offset_forecaster.1} parent=0 // pred_check
    _
  $region31: #{phase_offset_forecaster.1} parent=0 // pred_check_branch
    %844 = sbr.rel (0) target = $region33
  $region32: #{phase_offset_forecaster.1} parent=0 // pred_region
    _
  $region33: #{phase_offset_forecaster.1} parent=0 // pred_fallthru
    _
  // Predicated region
  $region34: #{phase_offset_forecaster.1} parent=0 // pred_check
    _
  $region35: #{phase_offset_forecaster.1} parent=0 // pred_check_branch
    %846 = sbr.rel (0) target = $region37
  $region36: #{phase_offset_forecaster.1} parent=0 // pred_region
    _
  $region37: #{phase_offset_forecaster.1} parent=0 // pred_fallthru
    _

</llo_original>
